<compile_context>
chip_gen: v5e
topology: v5e:2x2
jax: 0.10.0
libtpu: 0.0.40
codegen_flags: <defaults>
</compile_context>

<pallas_src>
import functools

import jax
import jax.numpy as jnp
from jax.experimental import pallas as pl
from jax.experimental.pallas import tpu as pltpu


def _leaky_relu(x, slope=0.2):
    # For 0 < slope < 1, max(x, slope*x) == LeakyReLU(x); one VPU op cheaper
    # than compare+select.
    return jnp.maximum(x, slope * x)


def _round_up(x, m):
    return ((x + m - 1) // m) * m


def generator_kernel(x_ref,
                     w1_ref, b1_ref,
                     w2_ref, b2_ref,
                     w3_ref, b3_ref,
                     w4_ref, b4_ref,
                     w5_ref, b5_ref,
                     o_ref):
    """Full MLP forward for one batch tile; everything resident in VMEM.

    Weights are bf16 (or f32), matmuls accumulate in f32; bias add, LeakyReLU
    and tanh are computed in f32. The final store may be f32 or bf16 depending
    on o_ref.dtype.
    """
    cd = w1_ref.dtype  # compute (MXU input) dtype

    h = x_ref[...].astype(cd)                                            # (TB, E)

    h = jnp.dot(h, w1_ref[...], preferred_element_type=jnp.float32) + b1_ref[...]
    h = _leaky_relu(h)                                                   # (TB, 128p)

    h = jnp.dot(h.astype(cd), w2_ref[...], preferred_element_type=jnp.float32) + b2_ref[...]
    h = _leaky_relu(h)                                                   # (TB, 128p)

    h = jnp.dot(h.astype(cd), w3_ref[...], preferred_element_type=jnp.float32) + b3_ref[...]
    h = _leaky_relu(h)                                                   # (TB, 128)

    h = jnp.dot(h.astype(cd), w4_ref[...], preferred_element_type=jnp.float32) + b4_ref[...]
    h = _leaky_relu(h)                                                   # (TB, 256)

    h = jnp.dot(h.astype(cd), w5_ref[...], preferred_element_type=jnp.float32) + b5_ref[...]
    o_ref[...] = jnp.tanh(h).astype(o_ref.dtype)                         # (TB, out_pad)


def init_params(key, entropy_size, output_h, output_w):
    """Deterministic PyTorch-style (uniform +/- 1/sqrt(fan_in)) Linear init.

    Weights are stored as (in_features, out_features) so the forward computes
    y = x @ W + b (equivalent to PyTorch's x @ weight.T + bias).
    Biases are kept 2-D (1, out) for TPU-friendly layout. All f32.
    """
    dims = [entropy_size, 32, 64, 128, 256, 2 * output_h * output_w]
    params = []
    for i in range(len(dims) - 1):
        fan_in, fan_out = dims[i], dims[i + 1]
        key, kw, kb = jax.random.split(key, 3)
        bound = 1.0 / (fan_in ** 0.5)
        w = jax.random.uniform(kw, (fan_in, fan_out), jnp.float32, -bound, bound)
        b = jax.random.uniform(kb, (1, fan_out), jnp.float32, -bound, bound)
        params += [w, b]
    return params


def _pad_params(params, dims_real, dims_pad, compute_dtype):
    """Zero-pad every layer to lane-dense (multiple-of-128) widths and cast
    weights to the compute dtype. Padded rows/cols are exactly zero, so the
    padded network computes identical values on the real lanes."""
    padded = []
    for i in range(len(dims_real) - 1):
        w, b = params[2 * i], params[2 * i + 1]
        in_r, out_r = dims_real[i], dims_real[i + 1]
        in_p, out_p = dims_pad[i], dims_pad[i + 1]
        w_p = jnp.zeros((in_p, out_p), compute_dtype)
        w_p = w_p.at[:in_r, :out_r].set(w.astype(compute_dtype))
        b_p = jnp.zeros((1, out_p), jnp.float32)
        b_p = b_p.at[:, :out_r].set(b.astype(jnp.float32))
        padded += [w_p, b_p]
    return padded


# Max rows processed per grid step. 1024 amortizes the ~0.35 us per-step
# overhead against the HBM writeback on v5e/v6e/v7x while keeping the working
# set (~8-10 MiB) inside the 32 MiB scoped-VMEM limit we request below
# (and well inside v5e's 16 MiB default even without it).
_MAX_BATCH_TILE = 1024


def _default_batch_tile(batch):
    """Pick a batch tile that (a) gives >= 2 grid steps for B > 256 so both
    v7x TensorCores get work, (b) keeps the step count EVEN for large B so the
    two cores stay balanced, and (c) caps the tile at _MAX_BATCH_TILE rows."""
    if batch <= 256:
        # Small batches: one right-sized tile (no over-padding); a split here
        # would just add fixed step overhead for negligible work.
        return _round_up(batch, 8)
    # Smallest even step count with <= _MAX_BATCH_TILE rows per step.
    nsteps = 2 * (-(-batch // (2 * _MAX_BATCH_TILE)))
    return _round_up(-(-batch // nsteps), 8)


@functools.partial(
    jax.jit,
    static_argnames=("output_h", "output_w", "batch_tile", "compute_dtype",
                     "output_dtype"))
def linear_generator_forward(x, params, *, output_h, output_w,
                             batch_tile=None, compute_dtype=jnp.bfloat16,
                             output_dtype=jnp.float32):
    """x: (B, entropy_size) f32 or bf16 -> (B, 2, output_h, output_w) output_dtype.

    output_dtype=jnp.bfloat16 halves the dominant HBM write traffic (tanh
    output is in [-1, 1], so bf16 is usually acceptable); default stays f32.
    """
    B, E = x.shape
    out_dim = 2 * output_h * output_w

    # Lane-dense (128-aligned) layer widths; entropy dim is left as-is (it is
    # the full extent of the input's last dim).
    dims_real = [E, 32, 64, 128, 256, out_dim]
    dims_pad = [E] + [_round_up(d, 128) for d in dims_real[1:]]
    out_pad = dims_pad[-1]

    padded_params = _pad_params(params, dims_real, dims_pad, compute_dtype)

    if batch_tile is None:
        batch_tile = _default_batch_tile(B)
    batch_tile = max(8, _round_up(batch_tile, 8))

    # Pad the batch up to a multiple of the tile (no hard assert). Input dtype
    # (f32 or bf16) is passed through unchanged -- no wrapper-side cast.
    Bp = _round_up(B, batch_tile)
    if Bp != B:
        x = jnp.pad(x, ((0, Bp - B), (0, 0)))

    # Grid-invariant, full-array blocks for the (small) weights/biases.
    weight_specs = [pl.BlockSpec(p.shape, lambda i: (0, 0)) for p in padded_params]

    out_flat = pl.pallas_call(
        generator_kernel,
        out_shape=jax.ShapeDtypeStruct((Bp, out_pad), output_dtype),
        grid_spec=pltpu.PrefetchScalarGridSpec(
            num_scalar_prefetch=0,
            grid=(Bp // batch_tile,),
            in_specs=[pl.BlockSpec((batch_tile, E), lambda i: (i, 0))] + weight_specs,
            out_specs=pl.BlockSpec((batch_tile, out_pad), lambda i: (i, 0)),
        ),
        compiler_params=pltpu.CompilerParams(
            dimension_semantics=("parallel",),
            vmem_limit_bytes=32 * 1024 * 1024,
        ),
    )(x, *padded_params)

    # NOTE: when Bp != B or out_pad != out_dim, this un-pad slice materializes
    # one extra pass over the (output-bandwidth-bound) result. Tile-multiple
    # batches with 128-aligned 2*H*W (e.g. the 16x16 demo, out_dim=512) make
    # it a pure view. Fuse the slice into the consumer if that matters.
    if Bp != B or out_pad != out_dim:
        out_flat = out_flat[:B, :out_dim]
    return out_flat.reshape(B, 2, output_h, output_w)


def _reference_forward(x, params, output_h, output_w, compute_dtype=jnp.bfloat16):
    """Plain-JAX reference with the same numerics (bf16 matmul inputs,
    f32 accumulation/bias/activations), using the *unpadded* parameters."""
    w1, b1, w2, b2, w3, b3, w4, b4, w5, b5 = params

    def lin(h, w, b):
        return jnp.dot(h.astype(compute_dtype), w.astype(compute_dtype),
                       preferred_element_type=jnp.float32) + b

    h = _leaky_relu(lin(x, w1, b1))
    h = _leaky_relu(lin(h, w2, b2))
    h = _leaky_relu(lin(h, w3, b3))
    h = _leaky_relu(lin(h, w4, b4))
    h = jnp.tanh(lin(h, w5, b5))
    return h.reshape(-1, 2, output_h, output_w)


if __name__ == "__main__":
    entropy_size = 128
    output_h, output_w = 16, 16

    key = jax.random.PRNGKey(0)
    key_x1, key_x2, key_p = jax.random.split(key, 3)
    params = init_params(key_p, entropy_size, output_h, output_w)

    # Tolerance: weights/matmul inputs are bf16 (f32 accumulation), so allow
    # for accumulation-order / rounding differences vs the XLA reference.
    atol = 2e-2

    # 1) Small batch, default tiling (single padded tile).
    batch1 = 12
    x1 = jax.random.normal(key_x1, (batch1, entropy_size), dtype=jnp.float32)
    out1 = linear_generator_forward(x1, params, output_h=output_h, output_w=output_w)
    out1 = jax.block_until_ready(out1)
    assert out1.shape == (batch1, 2, output_h, output_w), out1.shape
    assert out1.dtype == jnp.float32, out1.dtype
    ref1 = _reference_forward(x1, params, output_h, output_w)
    assert jnp.allclose(out1, ref1, atol=atol, rtol=0), "mismatch vs reference (small batch)"

    # 2) Non-multiple batch with an explicit tile -> multi-step grid + batch padding.
    batch2 = 40
    x2 = jax.random.normal(key_x2, (batch2, entropy_size), dtype=jnp.float32)
    out2 = linear_generator_forward(x2, params, output_h=output_h, output_w=output_w,
                                    batch_tile=16)
    out2 = jax.block_until_ready(out2)
    assert out2.shape == (batch2, 2, output_h, output_w), out2.shape
    ref2 = _reference_forward(x2, params, output_h, output_w)
    assert jnp.allclose(out2, ref2, atol=atol, rtol=0), "mismatch vs reference (tiled batch)"

    # 3) Opt-in bf16 output store (halves the dominant HBM write traffic).
    out3 = linear_generator_forward(x2, params, output_h=output_h, output_w=output_w,
                                    output_dtype=jnp.bfloat16)
    out3 = jax.block_until_ready(out3)
    assert out3.shape == (batch2, 2, output_h, output_w), out3.shape
    assert out3.dtype == jnp.bfloat16, out3.dtype
    assert jnp.allclose(out3.astype(jnp.float32), ref2, atol=5e-2, rtol=0), \
        "mismatch vs reference (bf16 output)"

    # 4) Default-tile selection sanity: >=2 steps (even) once B > 256,
    #    tile capped at 1024 rows, step count even for large B.
    assert _default_batch_tile(300) == 152      # 2 steps of 152
    assert _default_batch_tile(2048) == 1024    # 2 steps of 1024
    assert _default_batch_tile(3000) == 752     # 4 steps of 752 (even, <=1024)

    print("KERNEL_OK")
</pallas_src>

<mosaic_0001>
module attributes {stable_mosaic.version = 11 : i64} {
  func.func @generator_kernel(%arg0: i32, %arg1: memref<16x128xf32, #tpu.memory_space<vmem>>, %arg2: memref<128x128xbf16, #tpu.memory_space<vmem>>, %arg3: memref<1x128xf32, #tpu.memory_space<vmem>>, %arg4: memref<128x128xbf16, #tpu.memory_space<vmem>>, %arg5: memref<1x128xf32, #tpu.memory_space<vmem>>, %arg6: memref<128x128xbf16, #tpu.memory_space<vmem>>, %arg7: memref<1x128xf32, #tpu.memory_space<vmem>>, %arg8: memref<128x256xbf16, #tpu.memory_space<vmem>>, %arg9: memref<1x256xf32, #tpu.memory_space<vmem>>, %arg10: memref<256x512xbf16, #tpu.memory_space<vmem>>, %arg11: memref<1x512xf32, #tpu.memory_space<vmem>>, %arg12: memref<16x512xf32, #tpu.memory_space<vmem>>) attributes {dimension_semantics = [#tpu.dimension_semantics<parallel>], iteration_bounds = array<i64: 1>, scalar_prefetch = 0 : i64, scratch_operands = 0 : i64, tpu.core_type = #tpu.core_type<tc>, window_params = [{transform_indices = @transform_0, window_bounds = array<i64: 16, 128>}, {pipeline_mode = #tpu.pipeline_mode<synchronous>, transform_indices = @transform_1, window_bounds = array<i64: 128, 128>}, {pipeline_mode = #tpu.pipeline_mode<synchronous>, transform_indices = @transform_2, window_bounds = array<i64: 1, 128>}, {pipeline_mode = #tpu.pipeline_mode<synchronous>, transform_indices = @transform_3, window_bounds = array<i64: 128, 128>}, {pipeline_mode = #tpu.pipeline_mode<synchronous>, transform_indices = @transform_4, window_bounds = array<i64: 1, 128>}, {pipeline_mode = #tpu.pipeline_mode<synchronous>, transform_indices = @transform_5, window_bounds = array<i64: 128, 128>}, {pipeline_mode = #tpu.pipeline_mode<synchronous>, transform_indices = @transform_6, window_bounds = array<i64: 1, 128>}, {pipeline_mode = #tpu.pipeline_mode<synchronous>, transform_indices = @transform_7, window_bounds = array<i64: 128, 256>}, {pipeline_mode = #tpu.pipeline_mode<synchronous>, transform_indices = @transform_8, window_bounds = array<i64: 1, 256>}, {pipeline_mode = #tpu.pipeline_mode<synchronous>, transform_indices = @transform_9, window_bounds = array<i64: 256, 512>}, {pipeline_mode = #tpu.pipeline_mode<synchronous>, transform_indices = @transform_10, window_bounds = array<i64: 1, 512>}, {transform_indices = @transform_11, window_bounds = array<i64: 16, 512>}]} {
    %c0 = arith.constant 0 : index
    %c0_0 = arith.constant 0 : index
    %0 = vector.load %arg1[%c0, %c0_0] : memref<16x128xf32, #tpu.memory_space<vmem>>, vector<16x128xf32>
    %1 = arith.truncf %0 : vector<16x128xf32> to vector<16x128xbf16>
    %c0_1 = arith.constant 0 : index
    %c0_2 = arith.constant 0 : index
    %2 = vector.load %arg2[%c0_1, %c0_2] : memref<128x128xbf16, #tpu.memory_space<vmem>>, vector<128x128xbf16>
    %cst = arith.constant dense<0.000000e+00> : vector<16x128xf32>
    %3 = tpu.matmul %1, %2, %cst {dimension_numbers = #tpu.dot_dimension_numbers<[1], [0], [0], [1], [0, 0, 1, 1], [], []>} : vector<16x128xbf16>, vector<128x128xbf16>, vector<16x128xf32> -> vector<16x128xf32>
    %c0_3 = arith.constant 0 : index
    %c0_4 = arith.constant 0 : index
    %4 = vector.load %arg3[%c0_3, %c0_4] : memref<1x128xf32, #tpu.memory_space<vmem>>, vector<1x128xf32>
    %5 = vector.broadcast %4 : vector<1x128xf32> to vector<16x128xf32>
    %6 = arith.addf %3, %5 : vector<16x128xf32>
    %cst_5 = arith.constant 2.000000e-01 : f32
    %7 = vector.broadcast %cst_5 : f32 to vector<16x128xf32>
    %8 = arith.mulf %7, %6 : vector<16x128xf32>
    %9 = arith.maximumf %6, %8 : vector<16x128xf32>
    %10 = arith.truncf %9 : vector<16x128xf32> to vector<16x128xbf16>
    %c0_6 = arith.constant 0 : index
    %c0_7 = arith.constant 0 : index
    %11 = vector.load %arg4[%c0_6, %c0_7] : memref<128x128xbf16, #tpu.memory_space<vmem>>, vector<128x128xbf16>
    %cst_8 = arith.constant dense<0.000000e+00> : vector<16x128xf32>
    %12 = tpu.matmul %10, %11, %cst_8 {dimension_numbers = #tpu.dot_dimension_numbers<[1], [0], [0], [1], [0, 0, 1, 1], [], []>} : vector<16x128xbf16>, vector<128x128xbf16>, vector<16x128xf32> -> vector<16x128xf32>
    %c0_9 = arith.constant 0 : index
    %c0_10 = arith.constant 0 : index
    %13 = vector.load %arg5[%c0_9, %c0_10] : memref<1x128xf32, #tpu.memory_space<vmem>>, vector<1x128xf32>
    %14 = vector.broadcast %13 : vector<1x128xf32> to vector<16x128xf32>
    %15 = arith.addf %12, %14 : vector<16x128xf32>
    %cst_11 = arith.constant 2.000000e-01 : f32
    %16 = vector.broadcast %cst_11 : f32 to vector<16x128xf32>
    %17 = arith.mulf %16, %15 : vector<16x128xf32>
    %18 = arith.maximumf %15, %17 : vector<16x128xf32>
    %19 = arith.truncf %18 : vector<16x128xf32> to vector<16x128xbf16>
    %c0_12 = arith.constant 0 : index
    %c0_13 = arith.constant 0 : index
    %20 = vector.load %arg6[%c0_12, %c0_13] : memref<128x128xbf16, #tpu.memory_space<vmem>>, vector<128x128xbf16>
    %cst_14 = arith.constant dense<0.000000e+00> : vector<16x128xf32>
    %21 = tpu.matmul %19, %20, %cst_14 {dimension_numbers = #tpu.dot_dimension_numbers<[1], [0], [0], [1], [0, 0, 1, 1], [], []>} : vector<16x128xbf16>, vector<128x128xbf16>, vector<16x128xf32> -> vector<16x128xf32>
    %c0_15 = arith.constant 0 : index
    %c0_16 = arith.constant 0 : index
    %22 = vector.load %arg7[%c0_15, %c0_16] : memref<1x128xf32, #tpu.memory_space<vmem>>, vector<1x128xf32>
    %23 = vector.broadcast %22 : vector<1x128xf32> to vector<16x128xf32>
    %24 = arith.addf %21, %23 : vector<16x128xf32>
    %cst_17 = arith.constant 2.000000e-01 : f32
    %25 = vector.broadcast %cst_17 : f32 to vector<16x128xf32>
    %26 = arith.mulf %25, %24 : vector<16x128xf32>
    %27 = arith.maximumf %24, %26 : vector<16x128xf32>
    %28 = arith.truncf %27 : vector<16x128xf32> to vector<16x128xbf16>
    %c0_18 = arith.constant 0 : index
    %c0_19 = arith.constant 0 : index
    %29 = vector.load %arg8[%c0_18, %c0_19] : memref<128x256xbf16, #tpu.memory_space<vmem>>, vector<128x256xbf16>
    %cst_20 = arith.constant dense<0.000000e+00> : vector<16x256xf32>
    %30 = tpu.matmul %28, %29, %cst_20 {dimension_numbers = #tpu.dot_dimension_numbers<[1], [0], [0], [1], [0, 0, 1, 1], [], []>} : vector<16x128xbf16>, vector<128x256xbf16>, vector<16x256xf32> -> vector<16x256xf32>
    %c0_21 = arith.constant 0 : index
    %c0_22 = arith.constant 0 : index
    %31 = vector.load %arg9[%c0_21, %c0_22] : memref<1x256xf32, #tpu.memory_space<vmem>>, vector<1x256xf32>
    %32 = vector.broadcast %31 : vector<1x256xf32> to vector<16x256xf32>
    %33 = arith.addf %30, %32 : vector<16x256xf32>
    %cst_23 = arith.constant 2.000000e-01 : f32
    %34 = vector.broadcast %cst_23 : f32 to vector<16x256xf32>
    %35 = arith.mulf %34, %33 : vector<16x256xf32>
    %36 = arith.maximumf %33, %35 : vector<16x256xf32>
    %37 = arith.truncf %36 : vector<16x256xf32> to vector<16x256xbf16>
    %c0_24 = arith.constant 0 : index
    %c0_25 = arith.constant 0 : index
    %38 = vector.load %arg10[%c0_24, %c0_25] : memref<256x512xbf16, #tpu.memory_space<vmem>>, vector<256x512xbf16>
    %cst_26 = arith.constant dense<0.000000e+00> : vector<16x512xf32>
    %39 = tpu.matmul %37, %38, %cst_26 {dimension_numbers = #tpu.dot_dimension_numbers<[1], [0], [0], [1], [0, 0, 1, 1], [], []>} : vector<16x256xbf16>, vector<256x512xbf16>, vector<16x512xf32> -> vector<16x512xf32>
    %c0_27 = arith.constant 0 : index
    %c0_28 = arith.constant 0 : index
    %40 = vector.load %arg11[%c0_27, %c0_28] : memref<1x512xf32, #tpu.memory_space<vmem>>, vector<1x512xf32>
    %41 = vector.broadcast %40 : vector<1x512xf32> to vector<16x512xf32>
    %42 = arith.addf %39, %41 : vector<16x512xf32>
    %43 = math.tanh %42 : vector<16x512xf32>
    %c0_29 = arith.constant 0 : index
    %c0_30 = arith.constant 0 : index
    %44 = vector.load %arg12[%c0_29, %c0_30] : memref<16x512xf32, #tpu.memory_space<vmem>>, vector<16x512xf32>
    tpu.vector_store %arg12[%c0_29, %c0_30], %43 {strides = array<i32>} : memref<16x512xf32, #tpu.memory_space<vmem>>, vector<16x512xf32>,
    return
  }
  func.func @transform_0(%arg0: i32) -> (i32, i32) {
    %c0_i32 = arith.constant 0 : i32
    %c0_i32_0 = arith.constant 0 : i32
    return %arg0, %c0_i32 : i32, i32
  }
  func.func @transform_1(%arg0: i32) -> (i32, i32) {
    %c0_i32 = arith.constant 0 : i32
    %c0_i32_0 = arith.constant 0 : i32
    %c0_i32_1 = arith.constant 0 : i32
    return %c0_i32, %c0_i32_0 : i32, i32
  }
  func.func @transform_2(%arg0: i32) -> (i32, i32) {
    %c0_i32 = arith.constant 0 : i32
    %c0_i32_0 = arith.constant 0 : i32
    %c0_i32_1 = arith.constant 0 : i32
    return %c0_i32, %c0_i32_0 : i32, i32
  }
  func.func @transform_3(%arg0: i32) -> (i32, i32) {
    %c0_i32 = arith.constant 0 : i32
    %c0_i32_0 = arith.constant 0 : i32
    %c0_i32_1 = arith.constant 0 : i32
    return %c0_i32, %c0_i32_0 : i32, i32
  }
  func.func @transform_4(%arg0: i32) -> (i32, i32) {
    %c0_i32 = arith.constant 0 : i32
    %c0_i32_0 = arith.constant 0 : i32
    %c0_i32_1 = arith.constant 0 : i32
    return %c0_i32, %c0_i32_0 : i32, i32
  }
  func.func @transform_5(%arg0: i32) -> (i32, i32) {
    %c0_i32 = arith.constant 0 : i32
    %c0_i32_0 = arith.constant 0 : i32
    %c0_i32_1 = arith.constant 0 : i32
    return %c0_i32, %c0_i32_0 : i32, i32
  }
  func.func @transform_6(%arg0: i32) -> (i32, i32) {
    %c0_i32 = arith.constant 0 : i32
    %c0_i32_0 = arith.constant 0 : i32
    %c0_i32_1 = arith.constant 0 : i32
    return %c0_i32, %c0_i32_0 : i32, i32
  }
  func.func @transform_7(%arg0: i32) -> (i32, i32) {
    %c0_i32 = arith.constant 0 : i32
    %c0_i32_0 = arith.constant 0 : i32
    %c0_i32_1 = arith.constant 0 : i32
    return %c0_i32, %c0_i32_0 : i32, i32
  }
  func.func @transform_8(%arg0: i32) -> (i32, i32) {
    %c0_i32 = arith.constant 0 : i32
    %c0_i32_0 = arith.constant 0 : i32
    %c0_i32_1 = arith.constant 0 : i32
    return %c0_i32, %c0_i32_0 : i32, i32
  }
  func.func @transform_9(%arg0: i32) -> (i32, i32) {
    %c0_i32 = arith.constant 0 : i32
    %c0_i32_0 = arith.constant 0 : i32
    %c0_i32_1 = arith.constant 0 : i32
    return %c0_i32, %c0_i32_0 : i32, i32
  }
  func.func @transform_10(%arg0: i32) -> (i32, i32) {
    %c0_i32 = arith.constant 0 : i32
    %c0_i32_0 = arith.constant 0 : i32
    %c0_i32_1 = arith.constant 0 : i32
    return %c0_i32, %c0_i32_0 : i32, i32
  }
  func.func @transform_11(%arg0: i32) -> (i32, i32) {
    %c0_i32 = arith.constant 0 : i32
    %c0_i32_0 = arith.constant 0 : i32
    return %arg0, %c0_i32 : i32, i32
  }
}

</mosaic_0001>

<llo_original>
// kernel: linear_generator_forward.1
$region0: #{linear_generator_forward.1}
  #allocation0 [shape = 'u32[]', space=smem, size = 0x4, offset = 0x4, fixed_abs, tag = 'smem constant byte address 0x4 - core index']
  #allocation1 [shape = 'u32[72,128]{1,0:T(1,128)}', space=vmem, size = 0x9000, scoped, tag = 'internal scratch']
  %s0 = inlined_call_operand.vmem [shape: f32[16,128], index: 0, kind: input, shape index: {}]
  %s1 = inlined_call_operand.vmem [shape: bf16[128,128], index: 1, kind: input, shape index: {}]
  %s2 = inlined_call_operand.vmem [shape: f32[1,128], index: 2, kind: input, shape index: {}]
  %s3 = inlined_call_operand.vmem [shape: bf16[128,128], index: 3, kind: input, shape index: {}]
  %s4 = inlined_call_operand.vmem [shape: f32[1,128], index: 4, kind: input, shape index: {}]
  %s5 = inlined_call_operand.vmem [shape: bf16[128,128], index: 5, kind: input, shape index: {}]
  %s6 = inlined_call_operand.vmem [shape: f32[1,128], index: 6, kind: input, shape index: {}]
  %s7 = inlined_call_operand.vmem [shape: bf16[128,256], index: 7, kind: input, shape index: {}]
  %s8 = inlined_call_operand.vmem [shape: f32[1,256], index: 8, kind: input, shape index: {}]
  %s9 = inlined_call_operand.vmem [shape: bf16[256,512], index: 9, kind: input, shape index: {}]
  %s10 = inlined_call_operand.vmem [shape: f32[1,512], index: 10, kind: input, shape index: {}]
  %s11 = inlined_call_operand.vmem [shape: f32[16,512], index: 11, kind: output, shape index: {}]
  %s12 = sld [smem:[#allocation0]]
  $region54: #{linear_generator_forward.1} parent=0
    _
  %s14 = ssub.s32 1, %s12
  %s15 = scalar_select 0, %s14, %s12
  // Predicated region
  $region2: #{linear_generator_forward.1} parent=0 // pred_check
    _
  $region3: #{linear_generator_forward.1} parent=0 // pred_check_branch
    %17 = sbr.rel (0) target = $region5
  $region4: #{linear_generator_forward.1} parent=0 // pred_region
    _
  $region5: #{linear_generator_forward.1} parent=0 // pred_fallthru
    _
  // Predicated region
  $region6: #{linear_generator_forward.1} parent=0 // pred_check
    _
  $region7: #{linear_generator_forward.1} parent=0 // pred_check_branch
    %19 = sbr.rel (0) target = $region9
  $region8: #{linear_generator_forward.1} parent=0 // pred_region
    _
  $region9: #{linear_generator_forward.1} parent=0 // pred_fallthru
    _
  // Predicated region
  $region10: #{linear_generator_forward.1} parent=0 // pred_check
    _
  $region11: #{linear_generator_forward.1} parent=0 // pred_check_branch
    %21 = sbr.rel (0) target = $region13
  $region12: #{linear_generator_forward.1} parent=0 // pred_region
    _
  $region13: #{linear_generator_forward.1} parent=0 // pred_fallthru
    _
  // Predicated region
  $region14: #{linear_generator_forward.1} parent=0 // pred_check
    _
  $region15: #{linear_generator_forward.1} parent=0 // pred_check_branch
    %23 = sbr.rel (0) target = $region17
  $region16: #{linear_generator_forward.1} parent=0 // pred_region
    _
  $region17: #{linear_generator_forward.1} parent=0 // pred_fallthru
    _
  // Predicated region
  $region18: #{linear_generator_forward.1} parent=0 // pred_check
    _
  $region19: #{linear_generator_forward.1} parent=0 // pred_check_branch
    %25 = sbr.rel (0) target = $region21
  $region20: #{linear_generator_forward.1} parent=0 // pred_region
    _
  $region21: #{linear_generator_forward.1} parent=0 // pred_fallthru
    _
  // Predicated region
  $region22: #{linear_generator_forward.1} parent=0 // pred_check
    _
  $region23: #{linear_generator_forward.1} parent=0 // pred_check_branch
    %27 = sbr.rel (0) target = $region25
  $region24: #{linear_generator_forward.1} parent=0 // pred_region
    _
  $region25: #{linear_generator_forward.1} parent=0 // pred_fallthru
    _
  // Predicated region
  $region26: #{linear_generator_forward.1} parent=0 // pred_check
    _
  $region27: #{linear_generator_forward.1} parent=0 // pred_check_branch
    %29 = sbr.rel (0) target = $region29
  $region28: #{linear_generator_forward.1} parent=0 // pred_region
    _
  $region29: #{linear_generator_forward.1} parent=0 // pred_fallthru
    _
  // Predicated region
  $region30: #{linear_generator_forward.1} parent=0 // pred_check
    _
  $region31: #{linear_generator_forward.1} parent=0 // pred_check_branch
    %31 = sbr.rel (0) target = $region33
  $region32: #{linear_generator_forward.1} parent=0 // pred_region
    _
  $region33: #{linear_generator_forward.1} parent=0 // pred_fallthru
    _
  // Predicated region
  $region34: #{linear_generator_forward.1} parent=0 // pred_check
    _
  $region35: #{linear_generator_forward.1} parent=0 // pred_check_branch
    %33 = sbr.rel (0) target = $region37
  $region36: #{linear_generator_forward.1} parent=0 // pred_region
    _
  $region37: #{linear_generator_forward.1} parent=0 // pred_fallthru
    _
  // Predicated region
  $region38: #{linear_generator_forward.1} parent=0 // pred_check
    _
  $region39: #{linear_generator_forward.1} parent=0 // pred_check_branch
    %35 = sbr.rel (0) target = $region41
  $region40: #{linear_generator_forward.1} parent=0 // pred_region
    _
  $region41: #{linear_generator_forward.1} parent=0 // pred_fallthru
    _
  // Predicated region
  $region42: #{linear_generator_forward.1} parent=0 // pred_check
    _
  $region43: #{linear_generator_forward.1} parent=0 // pred_check_branch
    %37 = sbr.rel (0) target = $region45
  $region44: #{linear_generator_forward.1} parent=0 // pred_region
    _
  $region45: #{linear_generator_forward.1} parent=0 // pred_fallthru
    _
  %v38 = vld [vmem:[%s0] sm:$0xff]
  %v39 = vld [vmem:[%s0 + $0x8] sm:$0xff]
  %v40 = vpack.c.bf16 %v39, %v38
  %v41 = vld [vmem:[%s1] sm:$0xf]
  %v42 = vld [vmem:[%s1 + $0x4] sm:$0xf]
  %v43 = vld [vmem:[%s1 + $0x8] sm:$0xf]
  %v44 = vld [vmem:[%s1 + $0xc] sm:$0xf]
  %v45 = vld [vmem:[%s1 + $0x10] sm:$0xf]
  %v46 = vld [vmem:[%s1 + $0x14] sm:$0xf]
  %v47 = vld [vmem:[%s1 + $0x18] sm:$0xf]
  %v48 = vld [vmem:[%s1 + $0x1c] sm:$0xf]
  %v49 = vld [vmem:[%s1 + $0x20] sm:$0xf]
  %v50 = vld [vmem:[%s1 + $0x24] sm:$0xf]
  %v51 = vld [vmem:[%s1 + $0x28] sm:$0xf]
  %v52 = vld [vmem:[%s1 + $0x2c] sm:$0xf]
  %v53 = vld [vmem:[%s1 + $0x30] sm:$0xf]
  %v54 = vld [vmem:[%s1 + $0x34] sm:$0xf]
  %v55 = vld [vmem:[%s1 + $0x38] sm:$0xf]
  %v56 = vld [vmem:[%s1 + $0x3c] sm:$0xf]
  %v57 = vld [vmem:[%s2] sm:$0x1]
  %v59 = vperm.slane %v57, 0
  %v77 = vunpack.c.l.b16 %v41
  %v78 = vunpack.c.l.b16 %v42
  %v79 = vunpack.c.l.b16 %v43
  %v80 = vunpack.c.l.b16 %v44
  %v81 = vunpack.c.l.b16 %v45
  %v82 = vunpack.c.l.b16 %v46
  %v83 = vunpack.c.l.b16 %v47
  %v84 = vunpack.c.l.b16 %v48
  %v85 = vunpack.c.l.b16 %v49
  %v86 = vunpack.c.l.b16 %v50
  %v87 = vunpack.c.l.b16 %v51
  %v88 = vunpack.c.l.b16 %v52
  %v89 = vunpack.c.l.b16 %v53
  %v90 = vunpack.c.l.b16 %v54
  %v91 = vunpack.c.l.b16 %v55
  %v92 = vunpack.c.l.b16 %v56
  %v93 = vpack.c.b16 %v78, %v77
  %v94 = vpack.c.b16 %v80, %v79
  %v95 = vpack.c.b16 %v82, %v81
  %v96 = vpack.c.b16 %v84, %v83
  %v97 = vpack.c.b16 %v86, %v85
  %v98 = vpack.c.b16 %v88, %v87
  %v99 = vpack.c.b16 %v90, %v89
  %v100 = vpack.c.b16 %v92, %v91
  %109 = vmatpush.bf16.msra.mxu0 %v100
  %110 = vmatpush.bf16.msra.mxu0 %v99
  %111 = vmatpush.bf16.msra.mxu0 %v98
  %112 = vmatpush.bf16.msra.mxu0 %v97
  %113 = vmatpush.bf16.msra.mxu0 %v96
  %114 = vmatpush.bf16.msra.mxu0 %v95
  %115 = vmatpush.bf16.msra.mxu0 %v94
  %116 = vmatpush.bf16.msra.mxu0 %v93
  %117 = vmatmul.bf16.gmra.mxu0 %v40
  %v118 = vpop.f32.mrf.mxu0
  %v119 = vadd.f32 %v59, %v118
  %v120 = vpop.f32.mrf.mxu0
  %v121 = vadd.f32 %v59, %v120
  %122 = vdwg.mxu0
  %v123 = vmul.f32 %v119, 0.2
  %v124 = vmul.f32 %v121, 0.2
  %v125 = vmax.f32 %v119, %v123
  %v126 = vmax.f32 %v121, %v124
  %v127 = vpack.c.bf16 %v126, %v125
  %v128 = vld [vmem:[%s3] sm:$0xf]
  %v129 = vld [vmem:[%s3 + $0x4] sm:$0xf]
  %v130 = vld [vmem:[%s3 + $0x8] sm:$0xf]
  %v131 = vld [vmem:[%s3 + $0xc] sm:$0xf]
  %v132 = vld [vmem:[%s3 + $0x10] sm:$0xf]
  %v133 = vld [vmem:[%s3 + $0x14] sm:$0xf]
  %v134 = vld [vmem:[%s3 + $0x18] sm:$0xf]
  %v135 = vld [vmem:[%s3 + $0x1c] sm:$0xf]
  %v136 = vld [vmem:[%s3 + $0x20] sm:$0xf]
  %v137 = vld [vmem:[%s3 + $0x24] sm:$0xf]
  %v138 = vld [vmem:[%s3 + $0x28] sm:$0xf]
  %v139 = vld [vmem:[%s3 + $0x2c] sm:$0xf]
  %v140 = vld [vmem:[%s3 + $0x30] sm:$0xf]
  %v141 = vld [vmem:[%s3 + $0x34] sm:$0xf]
  %v142 = vld [vmem:[%s3 + $0x38] sm:$0xf]
  %v143 = vld [vmem:[%s3 + $0x3c] sm:$0xf]
  %v144 = vld [vmem:[%s4] sm:$0x1]
  %v146 = vperm.slane %v144, 0
  %v164 = vunpack.c.l.b16 %v128
  %v165 = vunpack.c.l.b16 %v129
  %v166 = vunpack.c.l.b16 %v130
  %v167 = vunpack.c.l.b16 %v131
  %v168 = vunpack.c.l.b16 %v132
  %v169 = vunpack.c.l.b16 %v133
  %v170 = vunpack.c.l.b16 %v134
  %v171 = vunpack.c.l.b16 %v135
  %v172 = vunpack.c.l.b16 %v136
  %v173 = vunpack.c.l.b16 %v137
  %v174 = vunpack.c.l.b16 %v138
  %v175 = vunpack.c.l.b16 %v139
  %v176 = vunpack.c.l.b16 %v140
  %v177 = vunpack.c.l.b16 %v141
  %v178 = vunpack.c.l.b16 %v142
  %v179 = vunpack.c.l.b16 %v143
  %v180 = vpack.c.b16 %v165, %v164
  %v181 = vpack.c.b16 %v167, %v166
  %v182 = vpack.c.b16 %v169, %v168
  %v183 = vpack.c.b16 %v171, %v170
  %v184 = vpack.c.b16 %v173, %v172
  %v185 = vpack.c.b16 %v175, %v174
  %v186 = vpack.c.b16 %v177, %v176
  %v187 = vpack.c.b16 %v179, %v178
  %196 = vmatpush.bf16.msra.mxu0 %v187
  %197 = vmatpush.bf16.msra.mxu0 %v186
  %198 = vmatpush.bf16.msra.mxu0 %v185
  %199 = vmatpush.bf16.msra.mxu0 %v184
  %200 = vmatpush.bf16.msra.mxu0 %v183
  %201 = vmatpush.bf16.msra.mxu0 %v182
  %202 = vmatpush.bf16.msra.mxu0 %v181
  %203 = vmatpush.bf16.msra.mxu0 %v180
  %204 = vmatmul.bf16.gmra.mxu0 %v127
  %v205 = vpop.f32.mrf.mxu0
  %v206 = vadd.f32 %v146, %v205
  %v207 = vpop.f32.mrf.mxu0
  %v208 = vadd.f32 %v146, %v207
  %209 = vdwg.mxu0
  %v210 = vmul.f32 %v206, 0.2
  %v211 = vmul.f32 %v208, 0.2
  %v212 = vmax.f32 %v206, %v210
  %v213 = vmax.f32 %v208, %v211
  %v214 = vpack.c.bf16 %v213, %v212
  %v215 = vld [vmem:[%s5] sm:$0xf]
  %v216 = vld [vmem:[%s5 + $0x4] sm:$0xf]
  %v217 = vld [vmem:[%s5 + $0x8] sm:$0xf]
  %v218 = vld [vmem:[%s5 + $0xc] sm:$0xf]
  %v219 = vld [vmem:[%s5 + $0x10] sm:$0xf]
  %v220 = vld [vmem:[%s5 + $0x14] sm:$0xf]
  %v221 = vld [vmem:[%s5 + $0x18] sm:$0xf]
  %v222 = vld [vmem:[%s5 + $0x1c] sm:$0xf]
  %v223 = vld [vmem:[%s5 + $0x20] sm:$0xf]
  %v224 = vld [vmem:[%s5 + $0x24] sm:$0xf]
  %v225 = vld [vmem:[%s5 + $0x28] sm:$0xf]
  %v226 = vld [vmem:[%s5 + $0x2c] sm:$0xf]
  %v227 = vld [vmem:[%s5 + $0x30] sm:$0xf]
  %v228 = vld [vmem:[%s5 + $0x34] sm:$0xf]
  %v229 = vld [vmem:[%s5 + $0x38] sm:$0xf]
  %v230 = vld [vmem:[%s5 + $0x3c] sm:$0xf]
  %v231 = vld [vmem:[%s6] sm:$0x1]
  %v233 = vperm.slane %v231, 0
  %v251 = vunpack.c.l.b16 %v215
  %v252 = vunpack.c.l.b16 %v216
  %v253 = vunpack.c.l.b16 %v217
  %v254 = vunpack.c.l.b16 %v218
  %v255 = vunpack.c.l.b16 %v219
  %v256 = vunpack.c.l.b16 %v220
  %v257 = vunpack.c.l.b16 %v221
  %v258 = vunpack.c.l.b16 %v222
  %v259 = vunpack.c.l.b16 %v223
  %v260 = vunpack.c.l.b16 %v224
  %v261 = vunpack.c.l.b16 %v225
  %v262 = vunpack.c.l.b16 %v226
  %v263 = vunpack.c.l.b16 %v227
  %v264 = vunpack.c.l.b16 %v228
  %v265 = vunpack.c.l.b16 %v229
  %v266 = vunpack.c.l.b16 %v230
  %v267 = vpack.c.b16 %v252, %v251
  %v268 = vpack.c.b16 %v254, %v253
  %v269 = vpack.c.b16 %v256, %v255
  %v270 = vpack.c.b16 %v258, %v257
  %v271 = vpack.c.b16 %v260, %v259
  %v272 = vpack.c.b16 %v262, %v261
  %v273 = vpack.c.b16 %v264, %v263
  %v274 = vpack.c.b16 %v266, %v265
  %283 = vmatpush.bf16.msra.mxu0 %v274
  %284 = vmatpush.bf16.msra.mxu0 %v273
  %285 = vmatpush.bf16.msra.mxu0 %v272
  %286 = vmatpush.bf16.msra.mxu0 %v271
  %287 = vmatpush.bf16.msra.mxu0 %v270
  %288 = vmatpush.bf16.msra.mxu0 %v269
  %289 = vmatpush.bf16.msra.mxu0 %v268
  %290 = vmatpush.bf16.msra.mxu0 %v267
  %291 = vmatmul.bf16.gmra.mxu0 %v214
  %v292 = vpop.f32.mrf.mxu0
  %v293 = vadd.f32 %v233, %v292
  %v294 = vpop.f32.mrf.mxu0
  %v295 = vadd.f32 %v233, %v294
  %296 = vdwg.mxu0
  %v297 = vmul.f32 %v293, 0.2
  %v298 = vmul.f32 %v295, 0.2
  %v299 = vmax.f32 %v293, %v297
  %v300 = vmax.f32 %v295, %v298
  %v301 = vpack.c.bf16 %v300, %v299
  %v302 = vld [vmem:[%s7] sm:$0xff]
  %v303 = vld [vmem:[%s7 + $0x8] sm:$0xff]
  %v304 = vld [vmem:[%s7 + $0x10] sm:$0xff]
  %v305 = vld [vmem:[%s7 + $0x18] sm:$0xff]
  %v306 = vld [vmem:[%s7 + $0x20] sm:$0xff]
  %v307 = vld [vmem:[%s7 + $0x28] sm:$0xff]
  %v308 = vld [vmem:[%s7 + $0x30] sm:$0xff]
  %v309 = vld [vmem:[%s7 + $0x38] sm:$0xff]
  %v310 = vld [vmem:[%s7 + $0x40] sm:$0xff]
  %v311 = vld [vmem:[%s7 + $0x48] sm:$0xff]
  %v312 = vld [vmem:[%s7 + $0x50] sm:$0xff]
  %v313 = vld [vmem:[%s7 + $0x58] sm:$0xff]
  %v314 = vld [vmem:[%s7 + $0x60] sm:$0xff]
  %v315 = vld [vmem:[%s7 + $0x68] sm:$0xff]
  %v316 = vld [vmem:[%s7 + $0x70] sm:$0xff]
  %v317 = vld [vmem:[%s7 + $0x78] sm:$0xff]
  %v318 = vld [vmem:[%s8] sm:$0x3]
  %v320 = vperm.slane %v318, 0
  %v321 = vperm.slane %v318, 1
  %v340 = vunpack.c.l.b16 %v302
  %v341 = vunpack.c.h.b16 %v302
  %v342 = vunpack.c.l.b16 %v303
  %v343 = vunpack.c.h.b16 %v303
  %v344 = vunpack.c.l.b16 %v304
  %v345 = vunpack.c.h.b16 %v304
  %v346 = vunpack.c.l.b16 %v305
  %v347 = vunpack.c.h.b16 %v305
  %v348 = vunpack.c.l.b16 %v306
  %v349 = vunpack.c.h.b16 %v306
  %v350 = vunpack.c.l.b16 %v307
  %v351 = vunpack.c.h.b16 %v307
  %v352 = vunpack.c.l.b16 %v308
  %v353 = vunpack.c.h.b16 %v308
  %v354 = vunpack.c.l.b16 %v309
  %v355 = vunpack.c.h.b16 %v309
  %v356 = vunpack.c.l.b16 %v310
  %v357 = vunpack.c.h.b16 %v310
  %v358 = vunpack.c.l.b16 %v311
  %v359 = vunpack.c.h.b16 %v311
  %v360 = vunpack.c.l.b16 %v312
  %v361 = vunpack.c.h.b16 %v312
  %v362 = vunpack.c.l.b16 %v313
  %v363 = vunpack.c.h.b16 %v313
  %v364 = vunpack.c.l.b16 %v314
  %v365 = vunpack.c.h.b16 %v314
  %v366 = vunpack.c.l.b16 %v315
  %v367 = vunpack.c.h.b16 %v315
  %v368 = vunpack.c.l.b16 %v316
  %v369 = vunpack.c.h.b16 %v316
  %v370 = vunpack.c.l.b16 %v317
  %v371 = vunpack.c.h.b16 %v317
  %v372 = vpack.c.b16 %v342, %v340
  %v373 = vpack.c.b16 %v343, %v341
  %v374 = vpack.c.b16 %v346, %v344
  %v375 = vpack.c.b16 %v347, %v345
  %v376 = vpack.c.b16 %v350, %v348
  %v377 = vpack.c.b16 %v351, %v349
  %v378 = vpack.c.b16 %v354, %v352
  %v379 = vpack.c.b16 %v355, %v353
  %v380 = vpack.c.b16 %v358, %v356
  %v381 = vpack.c.b16 %v359, %v357
  %v382 = vpack.c.b16 %v362, %v360
  %v383 = vpack.c.b16 %v363, %v361
  %v384 = vpack.c.b16 %v366, %v364
  %v385 = vpack.c.b16 %v367, %v365
  %v386 = vpack.c.b16 %v370, %v368
  %v387 = vpack.c.b16 %v371, %v369
  %404 = vmatpush.bf16.msra.mxu0 %v386
  %405 = vmatpush.bf16.msra.mxu0 %v384
  %406 = vmatpush.bf16.msra.mxu0 %v382
  %407 = vmatpush.bf16.msra.mxu0 %v380
  %408 = vmatpush.bf16.msra.mxu0 %v378
  %409 = vmatpush.bf16.msra.mxu0 %v376
  %410 = vmatpush.bf16.msra.mxu0 %v374
  %411 = vmatpush.bf16.msra.mxu0 %v372
  %412 = vmatmul.bf16.gmra.mxu0 %v301
  %v413 = vpop.f32.mrf.mxu0
  %v414 = vadd.f32 %v320, %v413
  %v415 = vpop.f32.mrf.mxu0
  %v416 = vadd.f32 %v320, %v415
  %417 = vdwg.mxu0
  %418 = vmatpush.bf16.msra.mxu0 %v387
  %419 = vmatpush.bf16.msra.mxu0 %v385
  %420 = vmatpush.bf16.msra.mxu0 %v383
  %421 = vmatpush.bf16.msra.mxu0 %v381
  %422 = vmatpush.bf16.msra.mxu0 %v379
  %423 = vmatpush.bf16.msra.mxu0 %v377
  %424 = vmatpush.bf16.msra.mxu0 %v375
  %425 = vmatpush.bf16.msra.mxu0 %v373
  %426 = vmatmul.bf16.gmra.mxu0 %v301
  %v427 = vpop.f32.mrf.mxu0
  %v428 = vadd.f32 %v321, %v427
  %v429 = vpop.f32.mrf.mxu0
  %v430 = vadd.f32 %v321, %v429
  %431 = vdwg.mxu0
  %v432 = vmul.f32 %v414, 0.2
  %v433 = vmul.f32 %v428, 0.2
  %v434 = vmul.f32 %v416, 0.2
  %v435 = vmul.f32 %v430, 0.2
  %v436 = vmax.f32 %v414, %v432
  %v437 = vmax.f32 %v428, %v433
  %v438 = vmax.f32 %v416, %v434
  %v439 = vmax.f32 %v430, %v435
  %v440 = vpack.c.bf16 %v438, %v436
  %v441 = vpack.c.bf16 %v439, %v437
  %v442 = vld [vmem:[%s9] sm:$0xff]
  %v443 = vld [vmem:[%s9 + $0x8] sm:$0xff]
  %v444 = vld [vmem:[%s9 + $0x10] sm:$0xff]
  %v445 = vld [vmem:[%s9 + $0x18] sm:$0xff]
  %v446 = vld [vmem:[%s9 + $0x20] sm:$0xff]
  %v447 = vld [vmem:[%s9 + $0x28] sm:$0xff]
  %v448 = vld [vmem:[%s9 + $0x30] sm:$0xff]
  %v449 = vld [vmem:[%s9 + $0x38] sm:$0xff]
  %v450 = vld [vmem:[%s9 + $0x40] sm:$0xff]
  %v451 = vld [vmem:[%s9 + $0x48] sm:$0xff]
  %v452 = vld [vmem:[%s9 + $0x50] sm:$0xff]
  %v453 = vld [vmem:[%s9 + $0x58] sm:$0xff]
  %v454 = vld [vmem:[%s9 + $0x60] sm:$0xff]
  %v455 = vld [vmem:[%s9 + $0x68] sm:$0xff]
  %v456 = vld [vmem:[%s9 + $0x70] sm:$0xff]
  %v457 = vld [vmem:[%s9 + $0x78] sm:$0xff]
  %v458 = vld [vmem:[%s9 + $0x80] sm:$0xff]
  %v459 = vld [vmem:[%s9 + $0x88] sm:$0xff]
  %v460 = vld [vmem:[%s9 + $0x90] sm:$0xff]
  %v461 = vld [vmem:[%s9 + $0x98] sm:$0xff]
  %v462 = vld [vmem:[%s9 + $0xa0] sm:$0xff]
  %v463 = vld [vmem:[%s9 + $0xa8] sm:$0xff]
  %v464 = vld [vmem:[%s9 + $0xb0] sm:$0xff]
  %v465 = vld [vmem:[%s9 + $0xb8] sm:$0xff]
  %v466 = vld [vmem:[%s9 + $0xc0] sm:$0xff]
  %v467 = vld [vmem:[%s9 + $0xc8] sm:$0xff]
  %v468 = vld [vmem:[%s9 + $0xd0] sm:$0xff]
  %v469 = vld [vmem:[%s9 + $0xd8] sm:$0xff]
  %v470 = vld [vmem:[%s9 + $0xe0] sm:$0xff]
  %v471 = vld [vmem:[%s9 + $0xe8] sm:$0xff]
  %v472 = vld [vmem:[%s9 + $0xf0] sm:$0xff]
  %v473 = vld [vmem:[%s9 + $0xf8] sm:$0xff]
  %v474 = vld [vmem:[%s9 + $0x100] sm:$0xff]
  %v475 = vld [vmem:[%s9 + $0x108] sm:$0xff]
  %v476 = vld [vmem:[%s9 + $0x110] sm:$0xff]
  %v477 = vld [vmem:[%s9 + $0x118] sm:$0xff]
  %v478 = vld [vmem:[%s9 + $0x120] sm:$0xff]
  %v479 = vld [vmem:[%s9 + $0x128] sm:$0xff]
  %v480 = vld [vmem:[%s9 + $0x130] sm:$0xff]
  %v481 = vld [vmem:[%s9 + $0x138] sm:$0xff]
  %v482 = vld [vmem:[%s9 + $0x140] sm:$0xff]
  %v483 = vld [vmem:[%s9 + $0x148] sm:$0xff]
  %v484 = vld [vmem:[%s9 + $0x150] sm:$0xff]
  %v485 = vld [vmem:[%s9 + $0x158] sm:$0xff]
  %v486 = vld [vmem:[%s9 + $0x160] sm:$0xff]
  %v487 = vld [vmem:[%s9 + $0x168] sm:$0xff]
  %v488 = vld [vmem:[%s9 + $0x170] sm:$0xff]
  %v489 = vld [vmem:[%s9 + $0x178] sm:$0xff]
  %v490 = vld [vmem:[%s9 + $0x180] sm:$0xff]
  %v491 = vld [vmem:[%s9 + $0x188] sm:$0xff]
  %v492 = vld [vmem:[%s9 + $0x190] sm:$0xff]
  %v493 = vld [vmem:[%s9 + $0x198] sm:$0xff]
  %v494 = vld [vmem:[%s9 + $0x1a0] sm:$0xff]
  %v495 = vld [vmem:[%s9 + $0x1a8] sm:$0xff]
  %v496 = vld [vmem:[%s9 + $0x1b0] sm:$0xff]
  %v497 = vld [vmem:[%s9 + $0x1b8] sm:$0xff]
  %v498 = vld [vmem:[%s9 + $0x1c0] sm:$0xff]
  %v499 = vld [vmem:[%s9 + $0x1c8] sm:$0xff]
  %v500 = vld [vmem:[%s9 + $0x1d0] sm:$0xff]
  %v501 = vld [vmem:[%s9 + $0x1d8] sm:$0xff]
  %v502 = vld [vmem:[%s9 + $0x1e0] sm:$0xff]
  %v503 = vld [vmem:[%s9 + $0x1e8] sm:$0xff]
  %v504 = vld [vmem:[%s9 + $0x1f0] sm:$0xff]
  %v505 = vld [vmem:[%s9 + $0x1f8] sm:$0xff]
  %v506 = vld [vmem:[%s10] sm:$0xf]
  %v508 = vperm.slane %v506, 0
  %v509 = vperm.slane %v506, 1
  %v510 = vperm.slane %v506, 2
  %v511 = vperm.slane %v506, 3
  %v580 = vunpack.c.l.b16 %v442
  %v581 = vunpack.c.h.b16 %v442
  %v582 = vunpack.c.l.b16 %v443
  %v583 = vunpack.c.h.b16 %v443
  %v584 = vunpack.c.l.b16 %v444
  %v585 = vunpack.c.h.b16 %v444
  %v586 = vunpack.c.l.b16 %v445
  %v587 = vunpack.c.h.b16 %v445
  %v588 = vunpack.c.l.b16 %v446
  %v589 = vunpack.c.h.b16 %v446
  %v590 = vunpack.c.l.b16 %v447
  %v591 = vunpack.c.h.b16 %v447
  %v592 = vunpack.c.l.b16 %v448
  %v593 = vunpack.c.h.b16 %v448
  %v594 = vunpack.c.l.b16 %v449
  %v595 = vunpack.c.h.b16 %v449
  %v596 = vunpack.c.l.b16 %v450
  %v597 = vunpack.c.h.b16 %v450
  %v598 = vunpack.c.l.b16 %v451
  %v599 = vunpack.c.h.b16 %v451
  %v600 = vunpack.c.l.b16 %v452
  %v601 = vunpack.c.h.b16 %v452
  %v602 = vunpack.c.l.b16 %v453
  %v603 = vunpack.c.h.b16 %v453
  %v604 = vunpack.c.l.b16 %v454
  %v605 = vunpack.c.h.b16 %v454
  %v606 = vunpack.c.l.b16 %v455
  %v607 = vunpack.c.h.b16 %v455
  %v608 = vunpack.c.l.b16 %v456
  %v609 = vunpack.c.h.b16 %v456
  %v610 = vunpack.c.l.b16 %v457
  %v611 = vunpack.c.h.b16 %v457
  %v612 = vunpack.c.l.b16 %v458
  %v613 = vunpack.c.h.b16 %v458
  %v614 = vunpack.c.l.b16 %v459
  %v615 = vunpack.c.h.b16 %v459
  %v616 = vunpack.c.l.b16 %v460
  %v617 = vunpack.c.h.b16 %v460
  %v618 = vunpack.c.l.b16 %v461
  %v619 = vunpack.c.h.b16 %v461
  %v620 = vunpack.c.l.b16 %v462
  %v621 = vunpack.c.h.b16 %v462
  %v622 = vunpack.c.l.b16 %v463
  %v623 = vunpack.c.h.b16 %v463
  %v624 = vunpack.c.l.b16 %v464
  %v625 = vunpack.c.h.b16 %v464
  %v626 = vunpack.c.l.b16 %v465
  %v627 = vunpack.c.h.b16 %v465
  %v628 = vunpack.c.l.b16 %v466
  %v629 = vunpack.c.h.b16 %v466
  %v630 = vunpack.c.l.b16 %v467
  %v631 = vunpack.c.h.b16 %v467
  %v632 = vunpack.c.l.b16 %v468
  %v633 = vunpack.c.h.b16 %v468
  %v634 = vunpack.c.l.b16 %v469
  %v635 = vunpack.c.h.b16 %v469
  %v636 = vunpack.c.l.b16 %v470
  %v637 = vunpack.c.h.b16 %v470
  %v638 = vunpack.c.l.b16 %v471
  %v639 = vunpack.c.h.b16 %v471
  %v640 = vunpack.c.l.b16 %v472
  %v641 = vunpack.c.h.b16 %v472
  %v642 = vunpack.c.l.b16 %v473
  %v643 = vunpack.c.h.b16 %v473
  %v644 = vunpack.c.l.b16 %v474
  %v645 = vunpack.c.h.b16 %v474
  %v646 = vunpack.c.l.b16 %v475
  %v647 = vunpack.c.h.b16 %v475
  %v648 = vunpack.c.l.b16 %v476
  %v649 = vunpack.c.h.b16 %v476
  %v650 = vunpack.c.l.b16 %v477
  %v651 = vunpack.c.h.b16 %v477
  %v652 = vunpack.c.l.b16 %v478
  %v653 = vunpack.c.h.b16 %v478
  %v654 = vunpack.c.l.b16 %v479
  %v655 = vunpack.c.h.b16 %v479
  %v656 = vunpack.c.l.b16 %v480
  %v657 = vunpack.c.h.b16 %v480
  %v658 = vunpack.c.l.b16 %v481
  %v659 = vunpack.c.h.b16 %v481
  %v660 = vunpack.c.l.b16 %v482
  %v661 = vunpack.c.h.b16 %v482
  %v662 = vunpack.c.l.b16 %v483
  %v663 = vunpack.c.h.b16 %v483
  %v664 = vunpack.c.l.b16 %v484
  %v665 = vunpack.c.h.b16 %v484
  %v666 = vunpack.c.l.b16 %v485
  %v667 = vunpack.c.h.b16 %v485
  %v668 = vunpack.c.l.b16 %v486
  %v669 = vunpack.c.h.b16 %v486
  %v670 = vunpack.c.l.b16 %v487
  %v671 = vunpack.c.h.b16 %v487
  %v672 = vunpack.c.l.b16 %v488
  %v673 = vunpack.c.h.b16 %v488
  %v674 = vunpack.c.l.b16 %v489
  %v675 = vunpack.c.h.b16 %v489
  %v676 = vunpack.c.l.b16 %v490
  %v677 = vunpack.c.h.b16 %v490
  %v678 = vunpack.c.l.b16 %v491
  %v679 = vunpack.c.h.b16 %v491
  %v680 = vunpack.c.l.b16 %v492
  %v681 = vunpack.c.h.b16 %v492
  %v682 = vunpack.c.l.b16 %v493
  %v683 = vunpack.c.h.b16 %v493
  %v684 = vunpack.c.l.b16 %v494
  %v685 = vunpack.c.h.b16 %v494
  %v686 = vunpack.c.l.b16 %v495
  %v687 = vunpack.c.h.b16 %v495
  %v688 = vunpack.c.l.b16 %v496
  %v689 = vunpack.c.h.b16 %v496
  %v690 = vunpack.c.l.b16 %v497
  %v691 = vunpack.c.h.b16 %v497
  %v692 = vunpack.c.l.b16 %v498
  %v693 = vunpack.c.h.b16 %v498
  %v694 = vunpack.c.l.b16 %v499
  %v695 = vunpack.c.h.b16 %v499
  %v696 = vunpack.c.l.b16 %v500
  %v697 = vunpack.c.h.b16 %v500
  %v698 = vunpack.c.l.b16 %v501
  %v699 = vunpack.c.h.b16 %v501
  %v700 = vunpack.c.l.b16 %v502
  %v701 = vunpack.c.h.b16 %v502
  %v702 = vunpack.c.l.b16 %v503
  %v703 = vunpack.c.h.b16 %v503
  %v704 = vunpack.c.l.b16 %v504
  %v705 = vunpack.c.h.b16 %v504
  %v706 = vunpack.c.l.b16 %v505
  %v707 = vunpack.c.h.b16 %v505
  %v708 = vpack.c.b16 %v584, %v580
  %v709 = vpack.c.b16 %v585, %v581
  %v710 = vpack.c.b16 %v586, %v582
  %v711 = vpack.c.b16 %v587, %v583
  %v712 = vpack.c.b16 %v592, %v588
  %v713 = vpack.c.b16 %v593, %v589
  %v714 = vpack.c.b16 %v594, %v590
  %v715 = vpack.c.b16 %v595, %v591
  %v716 = vpack.c.b16 %v600, %v596
  %v717 = vpack.c.b16 %v601, %v597
  %v718 = vpack.c.b16 %v602, %v598
  %v719 = vpack.c.b16 %v603, %v599
  %v720 = vpack.c.b16 %v608, %v604
  %v721 = vpack.c.b16 %v609, %v605
  %v722 = vpack.c.b16 %v610, %v606
  %v723 = vpack.c.b16 %v611, %v607
  %v724 = vpack.c.b16 %v616, %v612
  %v725 = vpack.c.b16 %v617, %v613
  %v726 = vpack.c.b16 %v618, %v614
  %v727 = vpack.c.b16 %v619, %v615
  %v728 = vpack.c.b16 %v624, %v620
  %v729 = vpack.c.b16 %v625, %v621
  %v730 = vpack.c.b16 %v626, %v622
  %v731 = vpack.c.b16 %v627, %v623
  %v732 = vpack.c.b16 %v632, %v628
  %v733 = vpack.c.b16 %v633, %v629
  %v734 = vpack.c.b16 %v634, %v630
  %v735 = vpack.c.b16 %v635, %v631
  %v736 = vpack.c.b16 %v640, %v636
  %v737 = vpack.c.b16 %v641, %v637
  %v738 = vpack.c.b16 %v642, %v638
  %v739 = vpack.c.b16 %v643, %v639
  %v740 = vpack.c.b16 %v648, %v644
  %v741 = vpack.c.b16 %v649, %v645
  %v742 = vpack.c.b16 %v650, %v646
  %v743 = vpack.c.b16 %v651, %v647
  %v744 = vpack.c.b16 %v656, %v652
  %v745 = vpack.c.b16 %v657, %v653
  %v746 = vpack.c.b16 %v658, %v654
  %v747 = vpack.c.b16 %v659, %v655
  %v748 = vpack.c.b16 %v664, %v660
  %v749 = vpack.c.b16 %v665, %v661
  %v750 = vpack.c.b16 %v666, %v662
  %v751 = vpack.c.b16 %v667, %v663
  %v752 = vpack.c.b16 %v672, %v668
  %v753 = vpack.c.b16 %v673, %v669
  %v754 = vpack.c.b16 %v674, %v670
  %v755 = vpack.c.b16 %v675, %v671
  %v756 = vpack.c.b16 %v680, %v676
  %v757 = vpack.c.b16 %v681, %v677
  %v758 = vpack.c.b16 %v682, %v678
  %v759 = vpack.c.b16 %v683, %v679
  %v760 = vpack.c.b16 %v688, %v684
  %v761 = vpack.c.b16 %v689, %v685
  %v762 = vpack.c.b16 %v690, %v686
  %v763 = vpack.c.b16 %v691, %v687
  %v764 = vpack.c.b16 %v696, %v692
  %v765 = vpack.c.b16 %v697, %v693
  %v766 = vpack.c.b16 %v698, %v694
  %v767 = vpack.c.b16 %v699, %v695
  %v768 = vpack.c.b16 %v704, %v700
  %v769 = vpack.c.b16 %v705, %v701
  %v770 = vpack.c.b16 %v706, %v702
  %v771 = vpack.c.b16 %v707, %v703
  %836 = vmatpush.bf16.msra.mxu0 %v736
  %837 = vmatpush.bf16.msra.mxu0 %v732
  %838 = vmatpush.bf16.msra.mxu0 %v728
  %839 = vmatpush.bf16.msra.mxu0 %v724
  %840 = vmatpush.bf16.msra.mxu0 %v720
  %841 = vmatpush.bf16.msra.mxu0 %v716
  %842 = vmatpush.bf16.msra.mxu0 %v712
  %843 = vmatpush.bf16.msra.mxu0 %v708
  %844 = vmatmul.bf16.gmra.mxu0 %v440
  %v845 = vpop.f32.mrf.mxu0
  %v846 = vadd.f32 %v508, %v845
  %v847 = vpop.f32.mrf.mxu0
  %v848 = vadd.f32 %v508, %v847
  %849 = vdwg.mxu0
  %850 = vmatpush.bf16.msra.mxu0 %v768
  %851 = vmatpush.bf16.msra.mxu0 %v764
  %852 = vmatpush.bf16.msra.mxu0 %v760
  %853 = vmatpush.bf16.msra.mxu0 %v756
  %854 = vmatpush.bf16.msra.mxu0 %v752
  %855 = vmatpush.bf16.msra.mxu0 %v748
  %856 = vmatpush.bf16.msra.mxu0 %v744
  %857 = vmatpush.bf16.msra.mxu0 %v740
  %858 = vmatmul.bf16.gmra.mxu0 %v441
  %v859 = vpop.f32.mrf.mxu0
  %v860 = vadd.f32 %v846, %v859
  %v861 = vpop.f32.mrf.mxu0
  %v862 = vadd.f32 %v848, %v861
  %863 = vdwg.mxu0
  %864 = vmatpush.bf16.msra.mxu0 %v737
  %865 = vmatpush.bf16.msra.mxu0 %v733
  %866 = vmatpush.bf16.msra.mxu0 %v729
  %867 = vmatpush.bf16.msra.mxu0 %v725
  %868 = vmatpush.bf16.msra.mxu0 %v721
  %869 = vmatpush.bf16.msra.mxu0 %v717
  %870 = vmatpush.bf16.msra.mxu0 %v713
  %871 = vmatpush.bf16.msra.mxu0 %v709
  %872 = vmatmul.bf16.gmra.mxu0 %v440
  %v873 = vpop.f32.mrf.mxu0
  %v874 = vadd.f32 %v509, %v873
  %v875 = vpop.f32.mrf.mxu0
  %v876 = vadd.f32 %v509, %v875
  %877 = vdwg.mxu0
  %878 = vmatpush.bf16.msra.mxu0 %v769
  %879 = vmatpush.bf16.msra.mxu0 %v765
  %880 = vmatpush.bf16.msra.mxu0 %v761
  %881 = vmatpush.bf16.msra.mxu0 %v757
  %882 = vmatpush.bf16.msra.mxu0 %v753
  %883 = vmatpush.bf16.msra.mxu0 %v749
  %884 = vmatpush.bf16.msra.mxu0 %v745
  %885 = vmatpush.bf16.msra.mxu0 %v741
  %886 = vmatmul.bf16.gmra.mxu0 %v441
  %v887 = vpop.f32.mrf.mxu0
  %v888 = vadd.f32 %v874, %v887
  %v889 = vpop.f32.mrf.mxu0
  %v890 = vadd.f32 %v876, %v889
  %891 = vdwg.mxu0
  %892 = vmatpush.bf16.msra.mxu0 %v738
  %893 = vmatpush.bf16.msra.mxu0 %v734
  %894 = vmatpush.bf16.msra.mxu0 %v730
  %895 = vmatpush.bf16.msra.mxu0 %v726
  %896 = vmatpush.bf16.msra.mxu0 %v722
  %897 = vmatpush.bf16.msra.mxu0 %v718
  %898 = vmatpush.bf16.msra.mxu0 %v714
  %899 = vmatpush.bf16.msra.mxu0 %v710
  %900 = vmatmul.bf16.gmra.mxu0 %v440
  %v901 = vpop.f32.mrf.mxu0
  %v902 = vadd.f32 %v510, %v901
  %v903 = vpop.f32.mrf.mxu0
  %v904 = vadd.f32 %v510, %v903
  %905 = vdwg.mxu0
  %906 = vmatpush.bf16.msra.mxu0 %v770
  %907 = vmatpush.bf16.msra.mxu0 %v766
  %908 = vmatpush.bf16.msra.mxu0 %v762
  %909 = vmatpush.bf16.msra.mxu0 %v758
  %910 = vmatpush.bf16.msra.mxu0 %v754
  %911 = vmatpush.bf16.msra.mxu0 %v750
  %912 = vmatpush.bf16.msra.mxu0 %v746
  %913 = vmatpush.bf16.msra.mxu0 %v742
  %914 = vmatmul.bf16.gmra.mxu0 %v441
  %v915 = vpop.f32.mrf.mxu0
  %v916 = vadd.f32 %v902, %v915
  %v917 = vpop.f32.mrf.mxu0
  %v918 = vadd.f32 %v904, %v917
  %919 = vdwg.mxu0
  %920 = vmatpush.bf16.msra.mxu0 %v739
  %921 = vmatpush.bf16.msra.mxu0 %v735
  %922 = vmatpush.bf16.msra.mxu0 %v731
  %923 = vmatpush.bf16.msra.mxu0 %v727
  %924 = vmatpush.bf16.msra.mxu0 %v723
  %925 = vmatpush.bf16.msra.mxu0 %v719
  %926 = vmatpush.bf16.msra.mxu0 %v715
  %927 = vmatpush.bf16.msra.mxu0 %v711
  %928 = vmatmul.bf16.gmra.mxu0 %v440
  %v929 = vpop.f32.mrf.mxu0
  %v930 = vadd.f32 %v511, %v929
  %v931 = vpop.f32.mrf.mxu0
  %v932 = vadd.f32 %v511, %v931
  %933 = vdwg.mxu0
  %934 = vmatpush.bf16.msra.mxu0 %v771
  %935 = vmatpush.bf16.msra.mxu0 %v767
  %936 = vmatpush.bf16.msra.mxu0 %v763
  %937 = vmatpush.bf16.msra.mxu0 %v759
  %938 = vmatpush.bf16.msra.mxu0 %v755
  %939 = vmatpush.bf16.msra.mxu0 %v751
  %940 = vmatpush.bf16.msra.mxu0 %v747
  %941 = vmatpush.bf16.msra.mxu0 %v743
  %942 = vmatmul.bf16.gmra.mxu0 %v441
  %v943 = vpop.f32.mrf.mxu0
  %v944 = vadd.f32 %v930, %v943
  %v945 = vpop.f32.mrf.mxu0
  %v946 = vadd.f32 %v932, %v945
  %947 = vdwg.mxu0
  %v948 = vtanh.pop %v860
  %v949 = vtanh.pop %v888
  %v950 = vtanh.pop %v916
  %v951 = vtanh.pop %v944
  %v952 = vtanh.pop %v862
  %v953 = vtanh.pop %v890
  %v954 = vtanh.pop %v918
  %v955 = vtanh.pop %v946
  %956 = vst [vmem:[%s11] sm:$0xff] %v948
  %957 = vst [vmem:[%s11 + $0x8] sm:$0xff] %v949
  %958 = vst [vmem:[%s11 + $0x10] sm:$0xff] %v950
  %959 = vst [vmem:[%s11 + $0x18] sm:$0xff] %v951
  %960 = vst [vmem:[%s11 + $0x20] sm:$0xff] %v952
  %961 = vst [vmem:[%s11 + $0x28] sm:$0xff] %v953
  %962 = vst [vmem:[%s11 + $0x30] sm:$0xff] %v954
  %963 = vst [vmem:[%s11 + $0x38] sm:$0xff] %v955
  // Predicated region
  $region46: #{linear_generator_forward.1} parent=0 // pred_check
    _
  $region47: #{linear_generator_forward.1} parent=0 // pred_check_branch
    %965 = sbr.rel (0) target = $region49
  $region48: #{linear_generator_forward.1} parent=0 // pred_region
    _
  $region49: #{linear_generator_forward.1} parent=0 // pred_fallthru
    _
  // Predicated region
  $region50: #{linear_generator_forward.1} parent=0 // pred_check
    _
  $region51: #{linear_generator_forward.1} parent=0 // pred_check_branch
    %967 = sbr.rel (0) target = $region53
  $region52: #{linear_generator_forward.1} parent=0 // pred_region
    _
  $region53: #{linear_generator_forward.1} parent=0 // pred_fallthru
    _

</llo_original>
